<compile_context>
chip_gen: v6e
topology: v6e:2x2x1
jax: 0.10.0
libtpu: 0.0.40
codegen_flags: <defaults>
</compile_context>

<pallas_src>
import functools

import jax
import jax.numpy as jnp
from jax import lax
from jax.experimental import pallas as pl
from jax.experimental.pallas import tpu as pltpu

LANE = 128
SUBLANE = 8


def _round_up(n: int, m: int) -> int:
    return ((n + m - 1) // m) * m


def _mlp_kernel(*refs, num_layers: int, mm_precision):
    # refs = (x_ref, w0, b0, w1, b1, ..., w_{L-1}, b_{L-1}, o_ref)
    x_ref = refs[0]
    o_ref = refs[-1]
    p = refs[1:-1]
    h = x_ref[...]
    for i in range(num_layers):
        w = p[2 * i][...]
        b = p[2 * i + 1][...]
        # MXU matmul (bf16 or f32 operands) with f32 accumulation, fused bias
        # add (+ ReLU on hidden layers).  Casting h to the weight dtype keeps
        # the MXU on its native bf16 path and halves vreg/VMEM pressure.
        h = jnp.dot(h.astype(w.dtype), w,
                    preferred_element_type=jnp.float32,
                    precision=mm_precision) + b
        if i < num_layers - 1:
            h = jnp.maximum(h, 0.0)
    o_ref[...] = h.astype(o_ref.dtype)


def mlp_fused_pallas(x, params, *, block_b, mm_precision):
    """Single fused pallas_call for the whole MLP.

    x: (B_pad, Din) with B_pad % block_b == 0.  Din / Dout are the logical
    (unpadded) feature dims; only hidden dims of the weights are 128-padded.
    params: list of (w (Din_i, Dout_i), b (1, Dout_i)).
    """
    B_pad, Din = x.shape
    num_layers = len(params)
    Dout = params[-1][0].shape[1]
    tb = block_b
    assert B_pad % tb == 0
    grid = (B_pad // tb,)

    # Activation is batch-tiled (pipelined across grid steps); weights/biases
    # are whole-array VMEM-resident blocks with constant index maps (~50 KB in
    # bf16 at width=100 — trivially within even v7x's 64 MiB VMEM).
    in_specs = [pl.BlockSpec((tb, Din), lambda i: (i, 0))]
    flat_params = []
    for w, b in params:
        in_specs.append(pl.BlockSpec(w.shape, lambda i: (0, 0)))
        in_specs.append(pl.BlockSpec(b.shape, lambda i: (0, 0)))
        flat_params += [w, b]
    # TODO(synk): for very large widths on v7x, single-buffer the invariant
    # weight BlockSpecs (pipeline_mode=pl.Buffered(1)) and/or concatenate the
    # weight stack into one array to cut DMA bookkeeping; unnecessary here.

    kernel = functools.partial(_mlp_kernel, num_layers=num_layers,
                               mm_precision=mm_precision)
    return pl.pallas_call(
        kernel,
        out_shape=jax.ShapeDtypeStruct((B_pad, Dout), x.dtype),
        grid=grid,
        in_specs=in_specs,
        out_specs=pl.BlockSpec((tb, Dout), lambda i: (i, 0)),
        compiler_params=pltpu.CompilerParams(
            # Shard batch tiles across both TensorCores on v7x.
            dimension_semantics=("parallel",),
        ),
    )(x, *flat_params)


def _mlp_forward(x, params, *, block_b, mm_precision):
    """pad batch -> fused kernel -> slice batch.  Runs under one jax.jit."""
    B, _ = x.shape
    b8 = _round_up(B, SUBLANE)           # minimum legal padded batch
    tb = min(block_b, b8)
    # v7x has 2 TensorCores: prefer >= 2 parallel grid steps when the batch is
    # big enough that halving the tile keeps it >= the 8-row sublane minimum.
    if b8 // tb < 2 and b8 >= 2 * SUBLANE:
        tb = _round_up((b8 + 1) // 2, SUBLANE)
    B_pad = _round_up(b8, tb)
    if B_pad != B:
        x = jnp.pad(x, ((0, B_pad - B), (0, 0)))
    out = mlp_fused_pallas(x, params, block_b=tb, mm_precision=mm_precision)
    return out[:B] if B_pad != B else out


class MLP:
    """JAX/Pallas port of the PyTorch MLP:
    Linear(dim_in, width) + ReLU, (num_hidden_layer-1) x [Linear(width, width) + ReLU],
    Linear(width, dim_out) — all fused into one Pallas kernel."""

    def __init__(self, dim_in, dim_out, num_hidden_layer=3, width=100,
                 use_bf16=True, block_b=512, key=None):
        if key is None:
            key = jax.random.PRNGKey(0)
        self.dim_in = dim_in
        self.dim_out = dim_out
        self.use_bf16 = use_bf16
        # bf16 operands hit the native MXU path (DEFAULT); exact-f32 nn.Linear
        # semantics need HIGHEST precision on TPU.
        self.mm_precision = (lax.Precision.DEFAULT if use_bf16
                             else lax.Precision.HIGHEST)
        w_dtype = jnp.bfloat16 if use_bf16 else jnp.float32

        dims = [dim_in] + [width] * num_hidden_layer + [dim_out]
        n_layers = len(dims) - 1

        self.params = []          # logical (un-padded, f32) params, for reference math
        self.padded_params = []   # hidden-dim-128-padded (+ optional bf16) kernel params
        for idx in range(n_layers):
            din, dout = dims[idx], dims[idx + 1]
            # Pad only the internal (hidden) dims to the 128-lane width; keep
            # external dim_in / dim_out at logical size to minimise HBM DMA.
            din_p = din if idx == 0 else _round_up(din, LANE)
            dout_p = dout if idx == n_layers - 1 else _round_up(dout, LANE)
            key, kw, kb = jax.random.split(key, 3)
            bound = 1.0 / float(din) ** 0.5
            # Deterministic init mirroring nn.Linear's U(-1/sqrt(fan_in), 1/sqrt(fan_in)).
            w = jax.random.uniform(kw, (din, dout), jnp.float32, -bound, bound)
            b = jax.random.uniform(kb, (1, dout), jnp.float32, -bound, bound)
            self.params.append((w, b))
            # Zero padding keeps the math exact: padded rows/cols contribute 0
            # and ReLU(0) = 0, so padded lanes stay 0 through the whole stack.
            w_pad = jnp.zeros((din_p, dout_p), jnp.float32).at[:din, :dout].set(w)
            b_pad = jnp.zeros((1, dout_p), jnp.float32).at[:, :dout].set(b)
            self.padded_params.append((w_pad.astype(w_dtype), b_pad))

        # Whole forward path (pad -> fused kernel -> slice) under one jit.
        self._forward = jax.jit(functools.partial(
            _mlp_forward, block_b=block_b, mm_precision=self.mm_precision))

    def __call__(self, x):
        assert x.shape[-1] == self.dim_in
        return self._forward(x, self.padded_params)


if __name__ == "__main__":
    key = jax.random.PRNGKey(0)
    k_in, k_model = jax.random.split(key)

    batch, dim_in, dim_out, width, n_hidden = 8, 16, 8, 100, 3
    x = jax.random.normal(k_in, (batch, dim_in), jnp.float32)

    model = MLP(dim_in, dim_out, num_hidden_layer=n_hidden, width=width, key=k_model)
    out = jax.block_until_ready(model(x))

    # Reference in plain JAX with the SAME numeric path as the kernel
    # (bf16 operands, f32 accumulation) so this checks the kernel itself.
    ref = x
    n_layers = len(model.params)
    for i, (w, b) in enumerate(model.params):
        wk = w.astype(jnp.bfloat16) if model.use_bf16 else w
        ref = jnp.dot(ref.astype(wk.dtype), wk,
                      preferred_element_type=jnp.float32,
                      precision=model.mm_precision) + b
        if i < n_layers - 1:
            ref = jnp.maximum(ref, 0.0)

    assert out.shape == (batch, dim_out)
    max_err = float(jnp.max(jnp.abs(out - ref)))
    assert jnp.allclose(out, ref, atol=1e-3, rtol=1e-3), max_err

    print("KERNEL_OK")
</pallas_src>

<mosaic_0001>
module attributes {stable_mosaic.version = 11 : i64} {
  func.func @_mlp_kernel(%arg0: i32, %arg1: memref<8x16xf32, #tpu.memory_space<vmem>>, %arg2: memref<16x128xbf16, #tpu.memory_space<vmem>>, %arg3: memref<1x128xf32, #tpu.memory_space<vmem>>, %arg4: memref<128x128xbf16, #tpu.memory_space<vmem>>, %arg5: memref<1x128xf32, #tpu.memory_space<vmem>>, %arg6: memref<128x128xbf16, #tpu.memory_space<vmem>>, %arg7: memref<1x128xf32, #tpu.memory_space<vmem>>, %arg8: memref<128x8xbf16, #tpu.memory_space<vmem>>, %arg9: memref<1x8xf32, #tpu.memory_space<vmem>>, %arg10: memref<8x8xf32, #tpu.memory_space<vmem>>) attributes {dimension_semantics = [#tpu.dimension_semantics<parallel>], iteration_bounds = array<i64: 1>, scalar_prefetch = 0 : i64, scratch_operands = 0 : i64, tpu.core_type = #tpu.core_type<tc>, window_params = [{transform_indices = @transform_0, window_bounds = array<i64: 8, 16>}, {pipeline_mode = #tpu.pipeline_mode<synchronous>, transform_indices = @transform_1, window_bounds = array<i64: 16, 128>}, {pipeline_mode = #tpu.pipeline_mode<synchronous>, transform_indices = @transform_2, window_bounds = array<i64: 1, 128>}, {pipeline_mode = #tpu.pipeline_mode<synchronous>, transform_indices = @transform_3, window_bounds = array<i64: 128, 128>}, {pipeline_mode = #tpu.pipeline_mode<synchronous>, transform_indices = @transform_4, window_bounds = array<i64: 1, 128>}, {pipeline_mode = #tpu.pipeline_mode<synchronous>, transform_indices = @transform_5, window_bounds = array<i64: 128, 128>}, {pipeline_mode = #tpu.pipeline_mode<synchronous>, transform_indices = @transform_6, window_bounds = array<i64: 1, 128>}, {pipeline_mode = #tpu.pipeline_mode<synchronous>, transform_indices = @transform_7, window_bounds = array<i64: 128, 8>}, {pipeline_mode = #tpu.pipeline_mode<synchronous>, transform_indices = @transform_8, window_bounds = array<i64: 1, 8>}, {transform_indices = @transform_9, window_bounds = array<i64: 8, 8>}]} {
    %c0 = arith.constant 0 : index
    %c0_0 = arith.constant 0 : index
    %0 = vector.load %arg1[%c0, %c0_0] : memref<8x16xf32, #tpu.memory_space<vmem>>, vector<8x16xf32>
    %c0_1 = arith.constant 0 : index
    %c0_2 = arith.constant 0 : index
    %1 = vector.load %arg2[%c0_1, %c0_2] : memref<16x128xbf16, #tpu.memory_space<vmem>>, vector<16x128xbf16>
    %c0_3 = arith.constant 0 : index
    %c0_4 = arith.constant 0 : index
    %2 = vector.load %arg3[%c0_3, %c0_4] : memref<1x128xf32, #tpu.memory_space<vmem>>, vector<1x128xf32>
    %3 = arith.truncf %0 : vector<8x16xf32> to vector<8x16xbf16>
    %cst = arith.constant dense<0.000000e+00> : vector<8x128xf32>
    %4 = tpu.matmul %3, %1, %cst {dimension_numbers = #tpu.dot_dimension_numbers<[1], [0], [0], [1], [0, 0, 1, 1], [], []>} : vector<8x16xbf16>, vector<16x128xbf16>, vector<8x128xf32> -> vector<8x128xf32>
    %5 = vector.broadcast %2 : vector<1x128xf32> to vector<8x128xf32>
    %6 = arith.addf %4, %5 : vector<8x128xf32>
    %cst_5 = arith.constant 0.000000e+00 : f32
    %7 = vector.broadcast %cst_5 : f32 to vector<8x128xf32>
    %8 = arith.maximumf %6, %7 : vector<8x128xf32>
    %c0_6 = arith.constant 0 : index
    %c0_7 = arith.constant 0 : index
    %9 = vector.load %arg4[%c0_6, %c0_7] : memref<128x128xbf16, #tpu.memory_space<vmem>>, vector<128x128xbf16>
    %c0_8 = arith.constant 0 : index
    %c0_9 = arith.constant 0 : index
    %10 = vector.load %arg5[%c0_8, %c0_9] : memref<1x128xf32, #tpu.memory_space<vmem>>, vector<1x128xf32>
    %11 = arith.truncf %8 : vector<8x128xf32> to vector<8x128xbf16>
    %cst_10 = arith.constant dense<0.000000e+00> : vector<8x128xf32>
    %12 = tpu.matmul %11, %9, %cst_10 {dimension_numbers = #tpu.dot_dimension_numbers<[1], [0], [0], [1], [0, 0, 1, 1], [], []>} : vector<8x128xbf16>, vector<128x128xbf16>, vector<8x128xf32> -> vector<8x128xf32>
    %13 = vector.broadcast %10 : vector<1x128xf32> to vector<8x128xf32>
    %14 = arith.addf %12, %13 : vector<8x128xf32>
    %cst_11 = arith.constant 0.000000e+00 : f32
    %15 = vector.broadcast %cst_11 : f32 to vector<8x128xf32>
    %16 = arith.maximumf %14, %15 : vector<8x128xf32>
    %c0_12 = arith.constant 0 : index
    %c0_13 = arith.constant 0 : index
    %17 = vector.load %arg6[%c0_12, %c0_13] : memref<128x128xbf16, #tpu.memory_space<vmem>>, vector<128x128xbf16>
    %c0_14 = arith.constant 0 : index
    %c0_15 = arith.constant 0 : index
    %18 = vector.load %arg7[%c0_14, %c0_15] : memref<1x128xf32, #tpu.memory_space<vmem>>, vector<1x128xf32>
    %19 = arith.truncf %16 : vector<8x128xf32> to vector<8x128xbf16>
    %cst_16 = arith.constant dense<0.000000e+00> : vector<8x128xf32>
    %20 = tpu.matmul %19, %17, %cst_16 {dimension_numbers = #tpu.dot_dimension_numbers<[1], [0], [0], [1], [0, 0, 1, 1], [], []>} : vector<8x128xbf16>, vector<128x128xbf16>, vector<8x128xf32> -> vector<8x128xf32>
    %21 = vector.broadcast %18 : vector<1x128xf32> to vector<8x128xf32>
    %22 = arith.addf %20, %21 : vector<8x128xf32>
    %cst_17 = arith.constant 0.000000e+00 : f32
    %23 = vector.broadcast %cst_17 : f32 to vector<8x128xf32>
    %24 = arith.maximumf %22, %23 : vector<8x128xf32>
    %c0_18 = arith.constant 0 : index
    %c0_19 = arith.constant 0 : index
    %25 = vector.load %arg8[%c0_18, %c0_19] : memref<128x8xbf16, #tpu.memory_space<vmem>>, vector<128x8xbf16>
    %c0_20 = arith.constant 0 : index
    %c0_21 = arith.constant 0 : index
    %26 = vector.load %arg9[%c0_20, %c0_21] : memref<1x8xf32, #tpu.memory_space<vmem>>, vector<1x8xf32>
    %27 = arith.truncf %24 : vector<8x128xf32> to vector<8x128xbf16>
    %cst_22 = arith.constant dense<0.000000e+00> : vector<8x8xf32>
    %28 = tpu.matmul %27, %25, %cst_22 {dimension_numbers = #tpu.dot_dimension_numbers<[1], [0], [0], [1], [0, 0, 1, 1], [], []>} : vector<8x128xbf16>, vector<128x8xbf16>, vector<8x8xf32> -> vector<8x8xf32>
    %29 = vector.broadcast %26 : vector<1x8xf32> to vector<8x8xf32>
    %30 = arith.addf %28, %29 : vector<8x8xf32>
    %c0_23 = arith.constant 0 : index
    %c0_24 = arith.constant 0 : index
    %31 = vector.load %arg10[%c0_23, %c0_24] : memref<8x8xf32, #tpu.memory_space<vmem>>, vector<8x8xf32>
    tpu.vector_store %arg10[%c0_23, %c0_24], %30 {strides = array<i32>} : memref<8x8xf32, #tpu.memory_space<vmem>>, vector<8x8xf32>,
    return
  }
  func.func @transform_0(%arg0: i32) -> (i32, i32) {
    %c0_i32 = arith.constant 0 : i32
    %c0_i32_0 = arith.constant 0 : i32
    return %arg0, %c0_i32 : i32, i32
  }
  func.func @transform_1(%arg0: i32) -> (i32, i32) {
    %c0_i32 = arith.constant 0 : i32
    %c0_i32_0 = arith.constant 0 : i32
    %c0_i32_1 = arith.constant 0 : i32
    return %c0_i32, %c0_i32_0 : i32, i32
  }
  func.func @transform_2(%arg0: i32) -> (i32, i32) {
    %c0_i32 = arith.constant 0 : i32
    %c0_i32_0 = arith.constant 0 : i32
    %c0_i32_1 = arith.constant 0 : i32
    return %c0_i32, %c0_i32_0 : i32, i32
  }
  func.func @transform_3(%arg0: i32) -> (i32, i32) {
    %c0_i32 = arith.constant 0 : i32
    %c0_i32_0 = arith.constant 0 : i32
    %c0_i32_1 = arith.constant 0 : i32
    return %c0_i32, %c0_i32_0 : i32, i32
  }
  func.func @transform_4(%arg0: i32) -> (i32, i32) {
    %c0_i32 = arith.constant 0 : i32
    %c0_i32_0 = arith.constant 0 : i32
    %c0_i32_1 = arith.constant 0 : i32
    return %c0_i32, %c0_i32_0 : i32, i32
  }
  func.func @transform_5(%arg0: i32) -> (i32, i32) {
    %c0_i32 = arith.constant 0 : i32
    %c0_i32_0 = arith.constant 0 : i32
    %c0_i32_1 = arith.constant 0 : i32
    return %c0_i32, %c0_i32_0 : i32, i32
  }
  func.func @transform_6(%arg0: i32) -> (i32, i32) {
    %c0_i32 = arith.constant 0 : i32
    %c0_i32_0 = arith.constant 0 : i32
    %c0_i32_1 = arith.constant 0 : i32
    return %c0_i32, %c0_i32_0 : i32, i32
  }
  func.func @transform_7(%arg0: i32) -> (i32, i32) {
    %c0_i32 = arith.constant 0 : i32
    %c0_i32_0 = arith.constant 0 : i32
    %c0_i32_1 = arith.constant 0 : i32
    return %c0_i32, %c0_i32_0 : i32, i32
  }
  func.func @transform_8(%arg0: i32) -> (i32, i32) {
    %c0_i32 = arith.constant 0 : i32
    %c0_i32_0 = arith.constant 0 : i32
    %c0_i32_1 = arith.constant 0 : i32
    return %c0_i32, %c0_i32_0 : i32, i32
  }
  func.func @transform_9(%arg0: i32) -> (i32, i32) {
    %c0_i32 = arith.constant 0 : i32
    %c0_i32_0 = arith.constant 0 : i32
    return %arg0, %c0_i32 : i32, i32
  }
}

</mosaic_0001>

<llo_original>
// kernel: _mlp_forward.1
$region0: #{_mlp_forward.1}
  #allocation0 [shape = 'u32[]', space=smem, size = 0x4, offset = 0x4, fixed_abs, tag = 'smem constant byte address 0x4 - core index']
  #allocation1 [shape = 'u32[144,128]{1,0:T(1,128)}', space=vmem, size = 0x12000, scoped, tag = 'internal scratch']
  %s0 = inlined_call_operand.vmem [shape: f32[8,16], index: 0, kind: input, shape index: {}]
  %s1 = inlined_call_operand.hbm [shape: bf16[16,128], index: 1, kind: input, shape index: {}]
  %s2 = inlined_call_operand.vmem [shape: f32[1,128], index: 2, kind: input, shape index: {}]
  %s3 = inlined_call_operand.vmem [shape: bf16[128,128], index: 3, kind: input, shape index: {}]
  %s4 = inlined_call_operand.hbm [shape: f32[1,128], index: 4, kind: input, shape index: {}]
  %s5 = inlined_call_operand.hbm [shape: bf16[128,128], index: 5, kind: input, shape index: {}]
  %s6 = inlined_call_operand.vmem [shape: f32[1,128], index: 6, kind: input, shape index: {}]
  %s7 = inlined_call_operand.vmem [shape: bf16[128,8], index: 7, kind: input, shape index: {}]
  %s8 = inlined_call_operand.vmem [shape: f32[1,8], index: 8, kind: input, shape index: {}]
  %s9 = inlined_call_operand.hbm [shape: f32[8,8], index: 9, kind: output, shape index: {}]
  %s10 = sld [smem:[#allocation0]]
  $region58: #{_mlp_forward.1} parent=0
    _
  %s12 = ssub.s32 1, %s10
  %s13 = scalar_select 0, %s12, %s10
  $region1: #{_mlp_forward.1} parent=0
    #allocation2 [shape = 'u8[4096]{0}', space=vmem, size = 0x1000, scoped, tag = 'input window, operand 1, single buffered']
    #allocation3 [shape = 's32[1]{0}', space=sflag, size = 0x4, scoped, tag = 'scoped memory for _mlp_forward.1']
    #allocation4 [shape = 's32[1]{0}', space=sflag, size = 0x4, scoped, tag = 'scoped memory for _mlp_forward.1']
    #allocation5 [shape = 'u8[512]{0}', space=vmem, size = 0x400, scoped, tag = 'input window, operand 4, single buffered']
    #allocation6 [shape = 's32[1]{0}', space=sflag, size = 0x4, scoped, tag = 'scoped memory for _mlp_forward.1']
    #allocation7 [shape = 'u8[32768]{0}', space=vmem, size = 0x8000, scoped, tag = 'input window, operand 5, single buffered']
    #allocation8 [shape = 'u8[4096]{0}', space=vmem, size = 0x1000, scoped, tag = 'output window, operand 0, single buffered']
    %14 = vsyncpa [#allocation3], 0
    %15 = vsyncpa [#allocation6], 0
    %16 = vsyncpa [#allocation4], 0
    // Predicated region
    $region2: #{_mlp_forward.1} parent=1 // pred_check
      _
    $region3: #{_mlp_forward.1} parent=1 // pred_check_branch
      %18 = sbr.rel (0) target = $region5
    $region4: #{_mlp_forward.1} parent=1 // pred_region
      _
    $region5: #{_mlp_forward.1} parent=1 // pred_fallthru
      _
    // Predicated region
    $region6: #{_mlp_forward.1} parent=1 // pred_check
      _
    $region7: #{_mlp_forward.1} parent=1 // pred_check_branch
      %20 = sbr.rel (0) target = $region9
    $region8: #{_mlp_forward.1} parent=1 // pred_region
      %s22 = ssub.s32 128, 128
      %23 = vsyncadd [#allocation3], %s22
      %s24 = sshll.u32 [#allocation2], 4
      %s25 = int_to_ptr.vmem [resolvable:$true] %s24
      %30 = dma.hbm_to_vmem [thread:$0]  %s1, 128, %s25, [#allocation3], 64, 64, 4
    $region9: #{_mlp_forward.1} parent=1 // pred_fallthru
      _
    // Predicated region
    $region10: #{_mlp_forward.1} parent=1 // pred_check
      _
    $region11: #{_mlp_forward.1} parent=1 // pred_check_branch
      %32 = sbr.rel (0) target = $region13
    $region12: #{_mlp_forward.1} parent=1 // pred_region
      _
    $region13: #{_mlp_forward.1} parent=1 // pred_fallthru
      _
    // Predicated region
    $region14: #{_mlp_forward.1} parent=1 // pred_check
      _
    $region15: #{_mlp_forward.1} parent=1 // pred_check_branch
      %34 = sbr.rel (0) target = $region17
    $region16: #{_mlp_forward.1} parent=1 // pred_region
      _
    $region17: #{_mlp_forward.1} parent=1 // pred_fallthru
      _
    // Predicated region
    $region18: #{_mlp_forward.1} parent=1 // pred_check
      _
    $region19: #{_mlp_forward.1} parent=1 // pred_check_branch
      %36 = sbr.rel (0) target = $region21
    $region20: #{_mlp_forward.1} parent=1 // pred_region
      %s38 = ssub.s32 16, 16
      %39 = vsyncadd [#allocation6], %s38
      %s41 = sshll.u32 [#allocation5], 4
      %s42 = int_to_ptr.vmem [resolvable:$true] %s41
      %44 = dma.hbm_to_vmem [thread:$0]  %s4, 16, %s42, [#allocation6]
    $region21: #{_mlp_forward.1} parent=1 // pred_fallthru
      _
    // Predicated region
    $region22: #{_mlp_forward.1} parent=1 // pred_check
      _
    $region23: #{_mlp_forward.1} parent=1 // pred_check_branch
      %46 = sbr.rel (0) target = $region25
    $region24: #{_mlp_forward.1} parent=1 // pred_region
      %s48 = ssub.s32 1024, 1024
      %49 = vsyncadd [#allocation6], %s48
      %s50 = sshll.u32 [#allocation7], 4
      %s51 = int_to_ptr.vmem [resolvable:$true] %s50
      %56 = dma.hbm_to_vmem [thread:$0]  %s5, 1024, %s51, [#allocation6], 64, 64, 4
    $region25: #{_mlp_forward.1} parent=1 // pred_fallthru
      _
    // Predicated region
    $region26: #{_mlp_forward.1} parent=1 // pred_check
      _
    $region27: #{_mlp_forward.1} parent=1 // pred_check_branch
      %58 = sbr.rel (0) target = $region29
    $region28: #{_mlp_forward.1} parent=1 // pred_region
      _
    $region29: #{_mlp_forward.1} parent=1 // pred_fallthru
      _
    // Predicated region
    $region30: #{_mlp_forward.1} parent=1 // pred_check
      _
    $region31: #{_mlp_forward.1} parent=1 // pred_check_branch
      %60 = sbr.rel (0) target = $region33
    $region32: #{_mlp_forward.1} parent=1 // pred_region
      _
    $region33: #{_mlp_forward.1} parent=1 // pred_fallthru
      _
    // Predicated region
    $region34: #{_mlp_forward.1} parent=1 // pred_check
      _
    $region35: #{_mlp_forward.1} parent=1 // pred_check_branch
      %62 = sbr.rel (0) target = $region37
    $region36: #{_mlp_forward.1} parent=1 // pred_region
      _
    $region37: #{_mlp_forward.1} parent=1 // pred_fallthru
      _
    // Predicated region
    $region38: #{_mlp_forward.1} parent=1 // pred_check
      _
    $region39: #{_mlp_forward.1} parent=1 // pred_check_branch
      %64 = sbr.rel (0) target = $region41
    $region40: #{_mlp_forward.1} parent=1 // pred_region
      %65 = dma.done [#allocation3], 128
    $region41: #{_mlp_forward.1} parent=1 // pred_fallthru
      _
    // Predicated region
    $region42: #{_mlp_forward.1} parent=1 // pred_check
      _
    $region43: #{_mlp_forward.1} parent=1 // pred_check_branch
      %67 = sbr.rel (0) target = $region45
    $region44: #{_mlp_forward.1} parent=1 // pred_region
      %68 = dma.done [#allocation6], 16
    $region45: #{_mlp_forward.1} parent=1 // pred_fallthru
      _
    // Predicated region
    $region46: #{_mlp_forward.1} parent=1 // pred_check
      _
    $region47: #{_mlp_forward.1} parent=1 // pred_check_branch
      %70 = sbr.rel (0) target = $region49
    $region48: #{_mlp_forward.1} parent=1 // pred_region
      %71 = dma.done [#allocation6], 1024
    $region49: #{_mlp_forward.1} parent=1 // pred_fallthru
      _
    %v73 = vld [vmem:[%s0] sm:$0xff]
    %v74 = vld [vmem:[#allocation2] sm:$0xf]
    %v75 = vld [vmem:[#allocation2 + $0x4] sm:$0xf]
    %v76 = vld [vmem:[%s2] sm:$0x1]
    %v77 = vpack.c.bf16 %v73, %v73
    %v79 = vlaneseq
    %v80 = vshrl.u32 %v79, 7
    %v81 = vsub.s32 0, %v80
    %v82 = vrot.slane %v76, %v81
    %v86 = vunpack.c.l.b16 %v74
    %v87 = vunpack.c.l.b16 %v75
    %v88 = vpack.c.b16 %v87, %v86
    %vm90 = vcmask 130048
    %v92 = vsel %vm90, %v77, 0
    %94 = vmatprep.subr.bf16.mxu0 0
    %95 = vmatpush1.bf16.msra.mxu0 0
    %96 = vmatprep.subr.bf16.mxu0 0
    %97 = vmatpush1.bf16.msra.mxu0 0
    %98 = vmatprep.subr.bf16.mxu0 0
    %99 = vmatpush1.bf16.msra.mxu0 0
    %100 = vmatprep.subr.bf16.mxu0 0
    %101 = vmatpush1.bf16.msra.mxu0 0
    %102 = vmatprep.subr.bf16.mxu0 0
    %103 = vmatpush1.bf16.msra.mxu0 0
    %104 = vmatprep.subr.bf16.mxu0 0
    %105 = vmatpush1.bf16.msra.mxu0 0
    %106 = vmatprep.subr.bf16.mxu0 0
    %107 = vmatpush1.bf16.msra.mxu0 0
    %108 = vmatprep.subr.bf16.mxu0 0
    %109 = vmatpush1.bf16.msra.mxu0 %v88
    %110 = vmatprep.subr.bf16.mxu0 0
    %111 = vmatpush2.bf16.msra.mxu0 0
    %112 = vmatprep.subr.bf16.mxu0 0
    %113 = vmatpush2.bf16.msra.mxu0 0
    %114 = vmatprep.subr.bf16.mxu0 0
    %115 = vmatpush2.bf16.msra.mxu0 0
    %116 = vmatprep.subr.bf16.mxu0 0
    %117 = vmatpush2.bf16.msra.mxu0 0
    %118 = vmatprep.subr.bf16.mxu0 0
    %119 = vmatpush2.bf16.msra.mxu0 0
    %120 = vmatprep.subr.bf16.mxu0 0
    %121 = vmatpush2.bf16.msra.mxu0 0
    %122 = vmatprep.subr.bf16.mxu0 0
    %123 = vmatpush2.bf16.msra.mxu0 0
    %124 = vmatprep.subr.bf16.mxu0 0
    %125 = vmatpush2.bf16.msra.mxu0 0
    %126 = vmatprep.mubr.bf16.mxu0 0
    %127 = vmatmul.mubr.bf16.gmra.mxu0 %v92
    %v128 = vpop.f32.mrf.mxu0
    %v129 = vadd.f32 %v82, %v128
    %v130 = vpop.f32.mrf.mxu0
    %v131 = vpop.f32.mrf.mxu0
    %v132 = vpop.f32.mrf.mxu0
    %133 = vdwg.mxu0
    %v134 = vmax.f32 %v129, 0.0
    %v135 = vld [vmem:[%s3] sm:$0xf]
    %v136 = vld [vmem:[%s3 + $0x4] sm:$0xf]
    %v137 = vld [vmem:[%s3 + $0x8] sm:$0xf]
    %v138 = vld [vmem:[%s3 + $0xc] sm:$0xf]
    %v139 = vld [vmem:[%s3 + $0x10] sm:$0xf]
    %v140 = vld [vmem:[%s3 + $0x14] sm:$0xf]
    %v141 = vld [vmem:[%s3 + $0x18] sm:$0xf]
    %v142 = vld [vmem:[%s3 + $0x1c] sm:$0xf]
    %v143 = vld [vmem:[%s3 + $0x20] sm:$0xf]
    %v144 = vld [vmem:[%s3 + $0x24] sm:$0xf]
    %v145 = vld [vmem:[%s3 + $0x28] sm:$0xf]
    %v146 = vld [vmem:[%s3 + $0x2c] sm:$0xf]
    %v147 = vld [vmem:[%s3 + $0x30] sm:$0xf]
    %v148 = vld [vmem:[%s3 + $0x34] sm:$0xf]
    %v149 = vld [vmem:[%s3 + $0x38] sm:$0xf]
    %v150 = vld [vmem:[%s3 + $0x3c] sm:$0xf]
    %v151 = vld [vmem:[#allocation5] sm:$0x1]
    %v152 = vpack.c.bf16 %v134, %v134
    %v154 = vlaneseq
    %v155 = vshrl.u32 %v154, 7
    %v156 = vsub.s32 0, %v155
    %v157 = vrot.slane %v151, %v156
    %v175 = vunpack.c.l.b16 %v135
    %v176 = vunpack.c.l.b16 %v136
    %v177 = vunpack.c.l.b16 %v137
    %v178 = vunpack.c.l.b16 %v138
    %v179 = vunpack.c.l.b16 %v139
    %v180 = vunpack.c.l.b16 %v140
    %v181 = vunpack.c.l.b16 %v141
    %v182 = vunpack.c.l.b16 %v142
    %v183 = vunpack.c.l.b16 %v143
    %v184 = vunpack.c.l.b16 %v144
    %v185 = vunpack.c.l.b16 %v145
    %v186 = vunpack.c.l.b16 %v146
    %v187 = vunpack.c.l.b16 %v147
    %v188 = vunpack.c.l.b16 %v148
    %v189 = vunpack.c.l.b16 %v149
    %v190 = vunpack.c.l.b16 %v150
    %v191 = vpack.c.b16 %v176, %v175
    %v192 = vpack.c.b16 %v178, %v177
    %v193 = vpack.c.b16 %v180, %v179
    %v194 = vpack.c.b16 %v182, %v181
    %v195 = vpack.c.b16 %v184, %v183
    %v196 = vpack.c.b16 %v186, %v185
    %v197 = vpack.c.b16 %v188, %v187
    %v198 = vpack.c.b16 %v190, %v189
    %207 = vmatprep.subr.bf16.mxu0 0
    %208 = vmatpush1.bf16.msra.mxu0 %v198
    %209 = vmatprep.subr.bf16.mxu0 0
    %210 = vmatpush1.bf16.msra.mxu0 %v197
    %211 = vmatprep.subr.bf16.mxu0 0
    %212 = vmatpush1.bf16.msra.mxu0 %v196
    %213 = vmatprep.subr.bf16.mxu0 0
    %214 = vmatpush1.bf16.msra.mxu0 %v195
    %215 = vmatprep.subr.bf16.mxu0 0
    %216 = vmatpush1.bf16.msra.mxu0 %v194
    %217 = vmatprep.subr.bf16.mxu0 0
    %218 = vmatpush1.bf16.msra.mxu0 %v193
    %219 = vmatprep.subr.bf16.mxu0 0
    %220 = vmatpush1.bf16.msra.mxu0 %v192
    %221 = vmatprep.subr.bf16.mxu0 0
    %222 = vmatpush1.bf16.msra.mxu0 %v191
    %223 = vmatprep.subr.bf16.mxu0 0
    %224 = vmatpush2.bf16.msra.mxu0 0
    %225 = vmatprep.subr.bf16.mxu0 0
    %226 = vmatpush2.bf16.msra.mxu0 0
    %227 = vmatprep.subr.bf16.mxu0 0
    %228 = vmatpush2.bf16.msra.mxu0 0
    %229 = vmatprep.subr.bf16.mxu0 0
    %230 = vmatpush2.bf16.msra.mxu0 0
    %231 = vmatprep.subr.bf16.mxu0 0
    %232 = vmatpush2.bf16.msra.mxu0 0
    %233 = vmatprep.subr.bf16.mxu0 0
    %234 = vmatpush2.bf16.msra.mxu0 0
    %235 = vmatprep.subr.bf16.mxu0 0
    %236 = vmatpush2.bf16.msra.mxu0 0
    %237 = vmatprep.subr.bf16.mxu0 0
    %238 = vmatpush2.bf16.msra.mxu0 0
    %239 = vmatprep.mubr.bf16.mxu0 0
    %240 = vmatmul.mubr.bf16.gmra.mxu0 %v152
    %v241 = vpop.f32.mrf.mxu0
    %v242 = vadd.f32 %v157, %v241
    %v243 = vpop.f32.mrf.mxu0
    %v244 = vpop.f32.mrf.mxu0
    %v245 = vpop.f32.mrf.mxu0
    %246 = vdwg.mxu0
    %v247 = vmax.f32 %v242, 0.0
    %v248 = vld [vmem:[#allocation7] sm:$0xf]
    %v249 = vld [vmem:[#allocation7 + $0x4] sm:$0xf]
    %v250 = vld [vmem:[#allocation7 + $0x8] sm:$0xf]
    %v251 = vld [vmem:[#allocation7 + $0xc] sm:$0xf]
    %v252 = vld [vmem:[#allocation7 + $0x10] sm:$0xf]
    %v253 = vld [vmem:[#allocation7 + $0x14] sm:$0xf]
    %v254 = vld [vmem:[#allocation7 + $0x18] sm:$0xf]
    %v255 = vld [vmem:[#allocation7 + $0x1c] sm:$0xf]
    %v256 = vld [vmem:[#allocation7 + $0x20] sm:$0xf]
    %v257 = vld [vmem:[#allocation7 + $0x24] sm:$0xf]
    %v258 = vld [vmem:[#allocation7 + $0x28] sm:$0xf]
    %v259 = vld [vmem:[#allocation7 + $0x2c] sm:$0xf]
    %v260 = vld [vmem:[#allocation7 + $0x30] sm:$0xf]
    %v261 = vld [vmem:[#allocation7 + $0x34] sm:$0xf]
    %v262 = vld [vmem:[#allocation7 + $0x38] sm:$0xf]
    %v263 = vld [vmem:[#allocation7 + $0x3c] sm:$0xf]
    %v264 = vld [vmem:[%s6] sm:$0x1]
    %v265 = vpack.c.bf16 %v247, %v247
    %v267 = vlaneseq
    %v268 = vshrl.u32 %v267, 7
    %v269 = vsub.s32 0, %v268
    %v270 = vrot.slane %v264, %v269
    %v288 = vunpack.c.l.b16 %v248
    %v289 = vunpack.c.l.b16 %v249
    %v290 = vunpack.c.l.b16 %v250
    %v291 = vunpack.c.l.b16 %v251
    %v292 = vunpack.c.l.b16 %v252
    %v293 = vunpack.c.l.b16 %v253
    %v294 = vunpack.c.l.b16 %v254
    %v295 = vunpack.c.l.b16 %v255
    %v296 = vunpack.c.l.b16 %v256
    %v297 = vunpack.c.l.b16 %v257
    %v298 = vunpack.c.l.b16 %v258
    %v299 = vunpack.c.l.b16 %v259
    %v300 = vunpack.c.l.b16 %v260
    %v301 = vunpack.c.l.b16 %v261
    %v302 = vunpack.c.l.b16 %v262
    %v303 = vunpack.c.l.b16 %v263
    %v304 = vpack.c.b16 %v289, %v288
    %v305 = vpack.c.b16 %v291, %v290
    %v306 = vpack.c.b16 %v293, %v292
    %v307 = vpack.c.b16 %v295, %v294
    %v308 = vpack.c.b16 %v297, %v296
    %v309 = vpack.c.b16 %v299, %v298
    %v310 = vpack.c.b16 %v301, %v300
    %v311 = vpack.c.b16 %v303, %v302
    %320 = vmatprep.subr.bf16.mxu0 0
    %321 = vmatpush1.bf16.msra.mxu0 %v311
    %322 = vmatprep.subr.bf16.mxu0 0
    %323 = vmatpush1.bf16.msra.mxu0 %v310
    %324 = vmatprep.subr.bf16.mxu0 0
    %325 = vmatpush1.bf16.msra.mxu0 %v309
    %326 = vmatprep.subr.bf16.mxu0 0
    %327 = vmatpush1.bf16.msra.mxu0 %v308
    %328 = vmatprep.subr.bf16.mxu0 0
    %329 = vmatpush1.bf16.msra.mxu0 %v307
    %330 = vmatprep.subr.bf16.mxu0 0
    %331 = vmatpush1.bf16.msra.mxu0 %v306
    %332 = vmatprep.subr.bf16.mxu0 0
    %333 = vmatpush1.bf16.msra.mxu0 %v305
    %334 = vmatprep.subr.bf16.mxu0 0
    %335 = vmatpush1.bf16.msra.mxu0 %v304
    %336 = vmatprep.subr.bf16.mxu0 0
    %337 = vmatpush2.bf16.msra.mxu0 0
    %338 = vmatprep.subr.bf16.mxu0 0
    %339 = vmatpush2.bf16.msra.mxu0 0
    %340 = vmatprep.subr.bf16.mxu0 0
    %341 = vmatpush2.bf16.msra.mxu0 0
    %342 = vmatprep.subr.bf16.mxu0 0
    %343 = vmatpush2.bf16.msra.mxu0 0
    %344 = vmatprep.subr.bf16.mxu0 0
    %345 = vmatpush2.bf16.msra.mxu0 0
    %346 = vmatprep.subr.bf16.mxu0 0
    %347 = vmatpush2.bf16.msra.mxu0 0
    %348 = vmatprep.subr.bf16.mxu0 0
    %349 = vmatpush2.bf16.msra.mxu0 0
    %350 = vmatprep.subr.bf16.mxu0 0
    %351 = vmatpush2.bf16.msra.mxu0 0
    %352 = vmatprep.mubr.bf16.mxu0 0
    %353 = vmatmul.mubr.bf16.gmra.mxu0 %v265
    %v354 = vpop.f32.mrf.mxu0
    %v355 = vadd.f32 %v270, %v354
    %v356 = vpop.f32.mrf.mxu0
    %v357 = vpop.f32.mrf.mxu0
    %v358 = vpop.f32.mrf.mxu0
    %359 = vdwg.mxu0
    %v360 = vmax.f32 %v355, 0.0
    %v361 = vld [vmem:[%s7] sm:$0xf]
    %v362 = vld [vmem:[%s7 + $0x4] sm:$0xf]
    %v363 = vld [vmem:[%s7 + $0x8] sm:$0xf]
    %v364 = vld [vmem:[%s7 + $0xc] sm:$0xf]
    %v365 = vld [vmem:[%s7 + $0x10] sm:$0xf]
    %v366 = vld [vmem:[%s7 + $0x14] sm:$0xf]
    %v367 = vld [vmem:[%s7 + $0x18] sm:$0xf]
    %v368 = vld [vmem:[%s7 + $0x1c] sm:$0xf]
    %v369 = vld [vmem:[%s7 + $0x20] sm:$0xf]
    %v370 = vld [vmem:[%s7 + $0x24] sm:$0xf]
    %v371 = vld [vmem:[%s7 + $0x28] sm:$0xf]
    %v372 = vld [vmem:[%s7 + $0x2c] sm:$0xf]
    %v373 = vld [vmem:[%s7 + $0x30] sm:$0xf]
    %v374 = vld [vmem:[%s7 + $0x34] sm:$0xf]
    %v375 = vld [vmem:[%s7 + $0x38] sm:$0xf]
    %v376 = vld [vmem:[%s7 + $0x3c] sm:$0xf]
    %v377 = vld [vmem:[%s8] sm:$0x1]
    %v378 = vpack.c.bf16 %v360, %v360
    %v380 = vlaneseq
    %v381 = vshrl.u32 %v380, 7
    %v382 = vsub.s32 0, %v381
    %v383 = vrot.slane %v377, %v382
    %v401 = vunpack.c.l.b16 %v361
    %v402 = vunpack.c.l.b16 %v362
    %v403 = vunpack.c.l.b16 %v363
    %v404 = vunpack.c.l.b16 %v364
    %v405 = vunpack.c.l.b16 %v365
    %v406 = vunpack.c.l.b16 %v366
    %v407 = vunpack.c.l.b16 %v367
    %v408 = vunpack.c.l.b16 %v368
    %v409 = vunpack.c.l.b16 %v369
    %v410 = vunpack.c.l.b16 %v370
    %v411 = vunpack.c.l.b16 %v371
    %v412 = vunpack.c.l.b16 %v372
    %v413 = vunpack.c.l.b16 %v373
    %v414 = vunpack.c.l.b16 %v374
    %v415 = vunpack.c.l.b16 %v375
    %v416 = vunpack.c.l.b16 %v376
    %v417 = vpack.c.b16 %v402, %v401
    %v418 = vpack.c.b16 %v404, %v403
    %v419 = vpack.c.b16 %v406, %v405
    %v420 = vpack.c.b16 %v408, %v407
    %v421 = vpack.c.b16 %v410, %v409
    %v422 = vpack.c.b16 %v412, %v411
    %v423 = vpack.c.b16 %v414, %v413
    %v424 = vpack.c.b16 %v416, %v415
    %433 = vmatprep.subr.bf16.mxu0 0
    %434 = vmatpush1.bf16.msra.mxu0 %v424
    %435 = vmatprep.subr.bf16.mxu0 0
    %436 = vmatpush1.bf16.msra.mxu0 %v423
    %437 = vmatprep.subr.bf16.mxu0 0
    %438 = vmatpush1.bf16.msra.mxu0 %v422
    %439 = vmatprep.subr.bf16.mxu0 0
    %440 = vmatpush1.bf16.msra.mxu0 %v421
    %441 = vmatprep.subr.bf16.mxu0 0
    %442 = vmatpush1.bf16.msra.mxu0 %v420
    %443 = vmatprep.subr.bf16.mxu0 0
    %444 = vmatpush1.bf16.msra.mxu0 %v419
    %445 = vmatprep.subr.bf16.mxu0 0
    %446 = vmatpush1.bf16.msra.mxu0 %v418
    %447 = vmatprep.subr.bf16.mxu0 0
    %448 = vmatpush1.bf16.msra.mxu0 %v417
    %449 = vmatprep.subr.bf16.mxu0 0
    %450 = vmatpush2.bf16.msra.mxu0 0
    %451 = vmatprep.subr.bf16.mxu0 0
    %452 = vmatpush2.bf16.msra.mxu0 0
    %453 = vmatprep.subr.bf16.mxu0 0
    %454 = vmatpush2.bf16.msra.mxu0 0
    %455 = vmatprep.subr.bf16.mxu0 0
    %456 = vmatpush2.bf16.msra.mxu0 0
    %457 = vmatprep.subr.bf16.mxu0 0
    %458 = vmatpush2.bf16.msra.mxu0 0
    %459 = vmatprep.subr.bf16.mxu0 0
    %460 = vmatpush2.bf16.msra.mxu0 0
    %461 = vmatprep.subr.bf16.mxu0 0
    %462 = vmatpush2.bf16.msra.mxu0 0
    %463 = vmatprep.subr.bf16.mxu0 0
    %464 = vmatpush2.bf16.msra.mxu0 0
    %465 = vmatprep.mubr.bf16.mxu0 0
    %466 = vmatmul.mubr.bf16.gmra.mxu0 %v378
    %v467 = vpop.f32.mrf.mxu0
    %v468 = vadd.f32 %v383, %v467
    %v469 = vpop.f32.mrf.mxu0
    %v470 = vpop.f32.mrf.mxu0
    %v471 = vpop.f32.mrf.mxu0
    %472 = vdwg.mxu0
    %vm473 = vcmask 64512
    %474 = vst.msk [vmem:[#allocation8] sm:$0xff] %vm473, %v468
    // Predicated region
    $region50: #{_mlp_forward.1} parent=1 // pred_check
      _
    $region51: #{_mlp_forward.1} parent=1 // pred_check_branch
      %476 = sbr.rel (0) target = $region53
    $region52: #{_mlp_forward.1} parent=1 // pred_region
      %s478 = ssub.s32 128, 128
      %479 = vsyncadd [#allocation4], %s478
      %s481 = sshll.u32 [#allocation8], 4
      %s482 = int_to_ptr.vmem [resolvable:$true] %s481
      %484 = dma.vmem_to_hbm [thread:$0]  %s482, 128, %s9, [#allocation4]
    $region53: #{_mlp_forward.1} parent=1 // pred_fallthru
      _
    // Predicated region
    $region54: #{_mlp_forward.1} parent=1 // pred_check
      _
    $region55: #{_mlp_forward.1} parent=1 // pred_check_branch
      %486 = sbr.rel (0) target = $region57
    $region56: #{_mlp_forward.1} parent=1 // pred_region
      %487 = dma.done [#allocation4], 128
    $region57: #{_mlp_forward.1} parent=1 // pred_fallthru
      _
    %488 = vsyncpa [#allocation3], 1
    %489 = vsyncpa [#allocation6], 1
    %490 = vsyncpa [#allocation4], 1

</llo_original>
